<compile_context>
chip_gen: v6e
topology: v6e:2x2x1
jax: 0.10.0
libtpu: 0.0.40
codegen_flags: <defaults>
</compile_context>

<pallas_src>
import math

import jax
import jax.numpy as jnp
from jax.experimental import pallas as pl
from jax.experimental.pallas import tpu as pltpu


def _round_up(x, m):
    return (x + m - 1) // m * m


# ----------------------------------------------------------------------------
# Kernel: fused GraphConv projection over a tile of node rows
#   proj[:, 0] = x . w_root + b   (root term, bias folded in)
#   proj[:, 1] = x . w_rel        (per-node scalar later segment-summed over edges)
# ----------------------------------------------------------------------------
def _proj_kernel(x_ref, w_ref, b_ref, proj_ref):
    p = jnp.dot(x_ref[...], w_ref[...], preferred_element_type=jnp.float32)  # [TM, 2]
    col = jax.lax.broadcasted_iota(jnp.int32, p.shape, dimension=1)
    proj_ref[...] = p + jnp.where(col == 0, b_ref[0], 0.0)


def graphconv_proj(x, w_fused, bias, *, tm=256, compute_dtype=jnp.float32):
    """x: [N, C]; w_fused: [C, 2] = [w_root | w_rel]; bias: scalar.

    Returns proj [N, 2] in f32.  Set compute_dtype=jnp.bfloat16 on v6e/v7x to halve
    HBM/VMEM traffic for the matmul operands (accumulation stays f32).
    """
    n, c = x.shape
    tm = min(tm, _round_up(n, 8))
    n_pad = _round_up(n, tm)
    if n_pad != n:
        x = jnp.pad(x, ((0, n_pad - n), (0, 0)))

    x = x.astype(compute_dtype)
    w_fused = w_fused.astype(compute_dtype)
    b_arr = jnp.reshape(jnp.asarray(bias, jnp.float32), (1,))

    proj = pl.pallas_call(
        _proj_kernel,
        out_shape=jax.ShapeDtypeStruct((n_pad, 2), jnp.float32),
        grid_spec=pltpu.PrefetchScalarGridSpec(
            num_scalar_prefetch=0,
            grid=(n_pad // tm,),
            in_specs=[
                pl.BlockSpec((tm, c), lambda i: (i, 0)),              # node-row tile of x
                pl.BlockSpec((c, 2), lambda i: (0, 0)),               # fused weights (resident)
                pl.BlockSpec(memory_space=pltpu.MemorySpace.SMEM),    # bias scalar in SMEM
            ],
            out_specs=pl.BlockSpec((tm, 2), lambda i: (i, 0)),
        ),
        compiler_params=pltpu.CompilerParams(
            dimension_semantics=("parallel",)),
    )(x, w_fused, b_arr)
    return proj[:n]


# ----------------------------------------------------------------------------
# SAGPooling forward (single-graph batch; ratio = 0.5 like SAGPooling default)
# ----------------------------------------------------------------------------
def sag_pooling(x, edge_index, edge_attr, batch, params, ratio=0.5):
    # TODO(synk): top-k is computed globally (valid for single-graph batches); PyG selects
    # ceil(ratio * N_g) per graph using `batch`, which would need a segment-wise top-k.
    n, _ = x.shape
    k = int(math.ceil(ratio * n))

    w_fused = jnp.concatenate(
        [params["w_root"], params["w_rel"]], axis=1).astype(jnp.float32)      # [C, 2]
    bias = jnp.reshape(params["b"], ())

    proj = graphconv_proj(x, w_fused, bias)   # [N, 2]
    root_plus_b = proj[:, 0]                  # x . w_root + b
    xr = proj[:, 1]                           # x . w_rel

    # Neighbor "add" aggregation over incoming edges, reassociated to per-node scalars:
    #   (sum_{j->i} x_j) . w_rel  ==  sum_{j->i} (x_j . w_rel)
    src, dst = edge_index[0], edge_index[1]
    agg = jax.ops.segment_sum(xr[src], dst, num_segments=n)                   # [N]

    score = jnp.tanh(root_plus_b + agg)                                       # [N]

    # top-k node selection (perm), as in torch_geometric topk().
    # TODO(synk): lax.top_k tie-breaking may differ from PyG's sort on exactly tied scores.
    _, perm = jax.lax.top_k(score, k)

    s_sel = score[perm]                       # [k]
    x_out = x[perm] * s_sel[:, None]          # gating; XLA fuses this with the gather
    batch_out = batch[perm]

    # filter_adj: keep edges whose endpoints both survive, relabel node ids.
    # TODO(synk): PyG compacts the edge list (dynamic length); invalid edges are kept
    # padded with -1 indices (and zeroed attrs) since shapes must be static.
    node_map = jnp.full((n,), -1, jnp.int32).at[perm].set(jnp.arange(k, dtype=jnp.int32))
    keep = (node_map[src] >= 0) & (node_map[dst] >= 0)
    new_edge_index = jnp.where(keep[None, :],
                               jnp.stack([node_map[src], node_map[dst]]),
                               -1)
    new_edge_attr = jnp.where(keep[:, None], edge_attr, 0.0)

    return x_out, new_edge_index, new_edge_attr, batch_out, perm, s_sel


if __name__ == "__main__":
    key = jax.random.PRNGKey(0)
    k_x, k_e, k_wr, k_wl, k_ea = jax.random.split(key, 5)

    N, C, E = 16, 32, 40  # nodes, dim_in, edges

    x = jax.random.normal(k_x, (N, C), jnp.float32)
    edge_index = jax.random.randint(k_e, (2, E), 0, N, jnp.int32)
    edge_attr = jax.random.normal(k_ea, (E, 4), jnp.float32)
    batch = jnp.zeros((N,), jnp.int32)

    # deterministic GraphConv(C, 1) parameters
    params = {
        "w_root": jax.random.normal(k_wr, (C, 1), jnp.float32) * 0.1,
        "w_rel": jax.random.normal(k_wl, (C, 1), jnp.float32) * 0.1,
        "b": jnp.full((1, 1), 0.05, jnp.float32),
    }

    out = sag_pooling(x, edge_index, edge_attr, batch, params, ratio=0.5)
    out = jax.block_until_ready(out)

    x_out, ei_out, ea_out, batch_out, perm, score_out = out
    assert x_out.shape == (8, C)
    assert ei_out.shape == (2, E)
    assert batch_out.shape == (8,)

    # Pure-JAX reference check of the score path (dense-adjacency formulation).
    adj = jnp.zeros((N, N), jnp.float32).at[edge_index[1], edge_index[0]].add(1.0)
    ref_score = jnp.tanh(x @ params["w_root"] + (adj @ x) @ params["w_rel"]
                         + params["b"])[:, 0]
    assert jnp.allclose(score_out, ref_score[perm], atol=1e-5)

    print("KERNEL_OK")
</pallas_src>

<mosaic_0001>
module attributes {stable_mosaic.version = 11 : i64} {
  func.func @_proj_kernel(%arg0: i32, %arg1: memref<16x32xf32, #tpu.memory_space<vmem>>, %arg2: memref<32x2xf32, #tpu.memory_space<vmem>>, %arg3: memref<1xf32, #tpu.memory_space<smem>>, %arg4: memref<16x2xf32, #tpu.memory_space<vmem>>) attributes {dimension_semantics = [#tpu.dimension_semantics<parallel>], iteration_bounds = array<i64: 1>, scalar_prefetch = 0 : i64, scratch_operands = 0 : i64, tpu.core_type = #tpu.core_type<tc>, window_params = [{transform_indices = @transform_0, window_bounds = array<i64: 16, 32>}, {pipeline_mode = #tpu.pipeline_mode<synchronous>, transform_indices = @transform_1, window_bounds = array<i64: 32, 2>}, {transform_indices = @transform_2, window_bounds = array<i64: 1>}, {transform_indices = @transform_3, window_bounds = array<i64: 16, 2>}]} {
    %c0 = arith.constant 0 : index
    %c0_0 = arith.constant 0 : index
    %0 = vector.load %arg1[%c0, %c0_0] : memref<16x32xf32, #tpu.memory_space<vmem>>, vector<16x32xf32>
    %c0_1 = arith.constant 0 : index
    %c0_2 = arith.constant 0 : index
    %1 = vector.load %arg2[%c0_1, %c0_2] : memref<32x2xf32, #tpu.memory_space<vmem>>, vector<32x2xf32>
    %cst = arith.constant dense<0.000000e+00> : vector<16x2xf32>
    %2 = tpu.matmul %0, %1, %cst {dimension_numbers = #tpu.dot_dimension_numbers<[1], [0], [0], [1], [0, 0, 1, 1], [], []>} : vector<16x32xf32>, vector<32x2xf32>, vector<16x2xf32> -> vector<16x2xf32>
    %3 = tpu.iota {dimensions = array<i32: 1>} : vector<16x2xi32>
    %c0_i32 = arith.constant 0 : i32
    %4 = vector.broadcast %c0_i32 : i32 to vector<16x2xi32>
    %5 = arith.cmpi eq, %3, %4 : vector<16x2xi32>
    %c0_3 = arith.constant 0 : index
    %6 = memref.load %arg3[%c0_3] : memref<1xf32, #tpu.memory_space<smem>>
    %cst_4 = arith.constant 0.000000e+00 : f32
    %7 = vector.broadcast %6 : f32 to vector<16x2xf32>
    %8 = vector.broadcast %cst_4 : f32 to vector<16x2xf32>
    %9 = arith.select %5, %7, %8 : vector<16x2xi1>, vector<16x2xf32>
    %10 = arith.addf %2, %9 : vector<16x2xf32>
    %c0_5 = arith.constant 0 : index
    %c0_6 = arith.constant 0 : index
    %11 = vector.load %arg4[%c0_5, %c0_6] : memref<16x2xf32, #tpu.memory_space<vmem>>, vector<16x2xf32>
    tpu.vector_store %arg4[%c0_5, %c0_6], %10 {strides = array<i32>} : memref<16x2xf32, #tpu.memory_space<vmem>>, vector<16x2xf32>,
    return
  }
  func.func @transform_0(%arg0: i32) -> (i32, i32) {
    %c0_i32 = arith.constant 0 : i32
    %c0_i32_0 = arith.constant 0 : i32
    return %arg0, %c0_i32 : i32, i32
  }
  func.func @transform_1(%arg0: i32) -> (i32, i32) {
    %c0_i32 = arith.constant 0 : i32
    %c0_i32_0 = arith.constant 0 : i32
    %c0_i32_1 = arith.constant 0 : i32
    return %c0_i32, %c0_i32_0 : i32, i32
  }
  func.func @transform_2(%arg0: i32) -> i32 {
    %c0_i32 = arith.constant 0 : i32
    %c0_i32_0 = arith.constant 0 : i32
    return %c0_i32 : i32
  }
  func.func @transform_3(%arg0: i32) -> (i32, i32) {
    %c0_i32 = arith.constant 0 : i32
    %c0_i32_0 = arith.constant 0 : i32
    return %arg0, %c0_i32 : i32, i32
  }
}

</mosaic_0001>

<llo_original>
// kernel: tpu_custom_call.1
$region0: #{tpu_custom_call.1}
  #allocation0 [shape = 'u32[]', space=smem, size = 0x4, offset = 0x4, fixed_abs, tag = 'smem constant byte address 0x4 - core index']
  #allocation1 [shape = 'u32[144,128]{1,0:T(1,128)}', space=vmem, size = 0x12000, scoped, tag = 'internal scratch']
  #allocation2 [shape = 'f32[1]{0:T(128)S(6)}', space=smem, size = 0x200, scoped, tag = 'scoped memory for tpu_custom_call.1']
  %s0 = inlined_call_operand.vmem [shape: f32[16,32], index: 0, kind: input, shape index: {}]
  %s1 = inlined_call_operand.vmem [shape: f32[32,2], index: 1, kind: input, shape index: {}]
  %s2 = inlined_call_operand.<no memory space> [shape: f32[1], index: 2, kind: input, shape index: {}]
  %s3 = inlined_call_operand.vmem [shape: f32[16,2], index: 3, kind: output, shape index: {}]
  %s4 = sld [smem:[#allocation0]]
  $region22: #{tpu_custom_call.1} parent=0
    _
  %s6 = ssub.s32 1, %s4
  %s7 = scalar_select 0, %s6, %s4
  %8 = sst [smem:[#allocation2]] %s2
  // Predicated region
  $region2: #{tpu_custom_call.1} parent=0 // pred_check
    _
  $region3: #{tpu_custom_call.1} parent=0 // pred_check_branch
    %10 = sbr.rel (0) target = $region5
  $region4: #{tpu_custom_call.1} parent=0 // pred_region
    _
  $region5: #{tpu_custom_call.1} parent=0 // pred_fallthru
    _
  // Predicated region
  $region6: #{tpu_custom_call.1} parent=0 // pred_check
    _
  $region7: #{tpu_custom_call.1} parent=0 // pred_check_branch
    %12 = sbr.rel (0) target = $region9
  $region8: #{tpu_custom_call.1} parent=0 // pred_region
    _
  $region9: #{tpu_custom_call.1} parent=0 // pred_fallthru
    _
  // Predicated region
  $region10: #{tpu_custom_call.1} parent=0 // pred_check
    _
  $region11: #{tpu_custom_call.1} parent=0 // pred_check_branch
    %14 = sbr.rel (0) target = $region13
  $region12: #{tpu_custom_call.1} parent=0 // pred_region
    _
  $region13: #{tpu_custom_call.1} parent=0 // pred_fallthru
    _
  %v15 = vld [vmem:[%s0] sm:$0xff]
  %v16 = vld [vmem:[%s0 + $0x8] sm:$0xff]
  %v17 = vld [vmem:[%s1] sm:$0xff]
  %v18 = vld [vmem:[%s1 + $0x8] sm:$0xff]
  %v19 = vld [vmem:[%s1 + $0x10] sm:$0xff]
  %v20 = vld [vmem:[%s1 + $0x18] sm:$0xff]
  %v21 = vlaneseq
  %v22 = vand.u32 %v21, 127
  %vm23 = vcmp.eq.s32.totalorder %v22, 0
  %s24 = sld [smem:[#allocation2]]
  %v25 = vstv %s24
  %v26 = vsel %vm23, %v25, 0.0
  %vm27 = vcmask 261120
  %v29 = vsel %vm27, %v15, 0
  %v32 = vsel %vm27, %v16, 0
  %34 = vmatprep.subr.mxu0 0.0
  %35 = vmatpush1.msra.mxu0 0.0
  %36 = vmatprep.subr.mxu0 0.0
  %37 = vmatpush1.msra.mxu0 0.0
  %38 = vmatprep.subr.mxu0 0.0
  %39 = vmatpush1.msra.mxu0 0.0
  %40 = vmatprep.subr.mxu0 0.0
  %41 = vmatpush1.msra.mxu0 0.0
  %42 = vmatprep.subr.mxu0 0.0
  %43 = vmatpush1.msra.mxu0 0.0
  %44 = vmatprep.subr.mxu0 0.0
  %45 = vmatpush1.msra.mxu0 0.0
  %46 = vmatprep.subr.mxu0 0.0
  %47 = vmatpush1.msra.mxu0 0.0
  %48 = vmatprep.subr.mxu0 0.0
  %49 = vmatpush1.msra.mxu0 0.0
  %50 = vmatprep.subr.mxu0 0.0
  %51 = vmatpush1.msra.mxu0 0.0
  %52 = vmatprep.subr.mxu0 0.0
  %53 = vmatpush1.msra.mxu0 0.0
  %54 = vmatprep.subr.mxu0 0.0
  %55 = vmatpush1.msra.mxu0 0.0
  %56 = vmatprep.subr.mxu0 0.0
  %57 = vmatpush1.msra.mxu0 0.0
  %58 = vmatprep.subr.mxu0 0.0
  %59 = vmatpush1.msra.mxu0 %v20
  %60 = vmatprep.subr.mxu0 0.0
  %61 = vmatpush1.msra.mxu0 %v19
  %62 = vmatprep.subr.mxu0 0.0
  %63 = vmatpush1.msra.mxu0 %v18
  %64 = vmatprep.subr.mxu0 0.0
  %65 = vmatpush1.msra.mxu0 %v17
  %66 = vmatprep.subr.mxu0 0.0
  %67 = vmatpush2.msra.mxu0 0.0
  %68 = vmatprep.subr.mxu0 0.0
  %69 = vmatpush2.msra.mxu0 0.0
  %70 = vmatprep.subr.mxu0 0.0
  %71 = vmatpush2.msra.mxu0 0.0
  %72 = vmatprep.subr.mxu0 0.0
  %73 = vmatpush2.msra.mxu0 0.0
  %74 = vmatprep.subr.mxu0 0.0
  %75 = vmatpush2.msra.mxu0 0.0
  %76 = vmatprep.subr.mxu0 0.0
  %77 = vmatpush2.msra.mxu0 0.0
  %78 = vmatprep.subr.mxu0 0.0
  %79 = vmatpush2.msra.mxu0 0.0
  %80 = vmatprep.subr.mxu0 0.0
  %81 = vmatpush2.msra.mxu0 0.0
  %82 = vmatprep.subr.mxu0 0.0
  %83 = vmatpush2.msra.mxu0 0.0
  %84 = vmatprep.subr.mxu0 0.0
  %85 = vmatpush2.msra.mxu0 0.0
  %86 = vmatprep.subr.mxu0 0.0
  %87 = vmatpush2.msra.mxu0 0.0
  %88 = vmatprep.subr.mxu0 0.0
  %89 = vmatpush2.msra.mxu0 0.0
  %90 = vmatprep.subr.mxu0 0.0
  %91 = vmatpush2.msra.mxu0 0.0
  %92 = vmatprep.subr.mxu0 0.0
  %93 = vmatpush2.msra.mxu0 0.0
  %94 = vmatprep.subr.mxu0 0.0
  %95 = vmatpush2.msra.mxu0 0.0
  %96 = vmatprep.subr.mxu0 0.0
  %97 = vmatpush2.msra.mxu0 0.0
  %98 = vmatprep.mubr.f32.mxu0 0.0
  %99 = vmatmul.mubr.f32.gmra.mxu0 %v29
  %v100 = vpop.f32.mrf.mxu0
  %v101 = vadd.f32 %v26, %v100
  %v102 = vpop.f32.mrf.mxu0
  %103 = vmatprep.mubr.f32.mxu0 0.0
  %104 = vmatmul.mubr.f32.gmra.mxu0 %v32
  %v105 = vpop.f32.mrf.mxu0
  %v106 = vadd.f32 %v26, %v105
  %v107 = vpop.f32.mrf.mxu0
  %108 = vdwg.mxu0
  %vm109 = vcmask 15360
  %110 = vst.msk [vmem:[%s3] sm:$0xff] %vm109, %v101
  %111 = vst.msk [vmem:[%s3 + $0x8] sm:$0xff] %vm109, %v106
  // Predicated region
  $region14: #{tpu_custom_call.1} parent=0 // pred_check
    _
  $region15: #{tpu_custom_call.1} parent=0 // pred_check_branch
    %113 = sbr.rel (0) target = $region17
  $region16: #{tpu_custom_call.1} parent=0 // pred_region
    _
  $region17: #{tpu_custom_call.1} parent=0 // pred_fallthru
    _
  // Predicated region
  $region18: #{tpu_custom_call.1} parent=0 // pred_check
    _
  $region19: #{tpu_custom_call.1} parent=0 // pred_check_branch
    %115 = sbr.rel (0) target = $region21
  $region20: #{tpu_custom_call.1} parent=0 // pred_region
    _
  $region21: #{tpu_custom_call.1} parent=0 // pred_fallthru
    _

</llo_original>
